<compile_context>
chip_gen: v5e
topology: v5e:2x2
jax: 0.10.0
libtpu: 0.0.40
codegen_flags: <defaults>
</compile_context>

<pallas_src>
from functools import partial

import jax
import jax.numpy as jnp
from jax.experimental import pallas as pl
from jax.experimental.pallas import tpu as pltpu


def _round_up(v, m):
    return (v + m - 1) // m * m


def _block_vmem_bytes(tile_m, c, hw, itemsize):
    """VMEM bytes of one (tile_m, c, hw) block after (sublane, lane) padding."""
    sub = {4: 8, 2: 16, 1: 32}.get(itemsize, 8)
    return tile_m * _round_up(c, sub) * _round_up(hw, 128) * itemsize


def _pick_tile_m(n, c, hw, itemsize, *, requested=256, x_budget_bytes=24 << 20):
    """Tile size over ROIs: >=2 grid steps when possible, x double-buffer under budget."""
    tm = max(8, min(requested, _round_up(pl.cdiv(n, 2), 8)))
    while tm > 8 and 2 * _block_vmem_bytes(tm, c, hw, itemsize) > x_budget_bytes:
        tm = max(8, _round_up(tm // 2, 8))
    return tm


# ----------------------------------------------------------------------------
# Main tiled kernel over ROIs: pool + fc_reg + fc_semantic + semantic score
# ----------------------------------------------------------------------------
def _head_kernel(
    x_ref,        # (TM, C, HW)       native NCHW tile (HW on lanes), pipelined
    wreg_ref,     # (C, OUT_REG_P)    resident VMEM, 1/HW folded in, zero-padded cols
    breg_ref,     # (1, OUT_REG_P)    resident VMEM
    wsem_ref,     # (C, SEM_P)        resident VMEM, 1/HW folded in, zero-padded cols
    bsem_ref,     # (1, SEM_P)        resident VMEM
    smat_ref,     # (SEM_P, NCLS_P)   resident VMEM, precomputed score matrix
    sem_out_ref,  # (TM, NCLS_P)      f32
    bbox_out_ref, # (TM, OUT_REG_P)   f32
):
    # Average pool = sum over the spatial (lane) axis; the 1/(H*W) scale is folded
    # into the weight matrices at prep time. f32 accumulation.
    xp = jnp.sum(x_ref[...], axis=2, dtype=jnp.float32)            # (TM, C)

    # bbox head: store immediately to keep live vregs low (no wide fused block).
    bbox_out_ref[...] = (
        jnp.dot(xp, wreg_ref[...], preferred_element_type=jnp.float32)
        + breg_ref[...]
    )

    # semantic head: semantic_feature @ score_mat.
    sem_feat = (
        jnp.dot(xp, wsem_ref[...], preferred_element_type=jnp.float32)
        + bsem_ref[...]
    )                                                               # (TM, SEM_P)
    sem_out_ref[...] = jnp.dot(
        sem_feat, smat_ref[...], preferred_element_type=jnp.float32
    )


# ----------------------------------------------------------------------------
# One-time, N-independent parameter preparation (call once per parameter set)
# ----------------------------------------------------------------------------
def prepare_head_params(params, roi_feat_size=(7, 7)):
    """Fuse / pad the head parameters and precompute score_mat. Run once at load."""
    h, w = roi_feat_size
    hw = h * w
    inv_hw = jnp.float32(1.0 / hw)
    f32 = jnp.float32

    num_classes = params["vec"].shape[1]
    semantic_dims = params["fc_semantic_w"].shape[0]
    out_reg = params["fc_reg_w"].shape[0]          # 4 * num_classes
    in_channels = params["fc_reg_w"].shape[1]

    out_reg_p = _round_up(out_reg, 128)
    sem_p = _round_up(semantic_dims, 128)
    ncls_p = _round_up(num_classes, 128)

    # Lane-padded (zero) weight / bias blocks; 1/(H*W) pool scale folded in.
    wreg = (
        jnp.zeros((in_channels, out_reg_p), f32)
        .at[:, :out_reg].set(params["fc_reg_w"].astype(f32).T * inv_hw)
    )
    breg = jnp.zeros((1, out_reg_p), f32).at[0, :out_reg].set(
        params["fc_reg_b"].astype(f32))
    wsem = (
        jnp.zeros((in_channels, sem_p), f32)
        .at[:, :semantic_dims].set(params["fc_semantic_w"].astype(f32).T * inv_hw)
    )
    bsem = jnp.zeros((1, sem_p), f32).at[0, :semantic_dims].set(
        params["fc_semantic_b"].astype(f32))

    # N-independent score matrix: tiny (sem x sem / sem x ncls) -> plain XLA, f32.
    kv = (
        params["voc"].astype(f32) @ params["kernel_semantic_w"].astype(f32).T
        + params["kernel_semantic_b"].astype(f32)
    )
    score_mat = jnp.tanh(kv @ params["vec"].astype(f32))            # (sem, ncls)
    # Padded sem-feature columns are exactly zero, so padded score_mat rows never
    # contribute; padded class columns are sliced off after the kernel.
    smat = (
        jnp.zeros((sem_p, ncls_p), f32)
        .at[:semantic_dims, :num_classes].set(score_mat)
    )

    arrays = {"wreg": wreg, "breg": breg, "wsem": wsem, "bsem": bsem, "smat": smat}
    meta = {
        "num_classes": int(num_classes),
        "out_reg": int(out_reg),
        "in_channels": int(in_channels),
        "roi_feat_hw": int(hw),
    }
    return arrays, meta


# ----------------------------------------------------------------------------
# Forward wrapper
# ----------------------------------------------------------------------------
def bbox_semantic_head_forward(x, arrays, meta, *, tile_m=256):
    """x: (N, C, H, W). Returns (semantic_score (N, num_classes), bbox_pred (N, 4*num_classes))."""
    n, c, h, w = x.shape
    hw = h * w
    assert c == meta["in_channels"] and hw == meta["roi_feat_hw"]

    out_reg_p = arrays["wreg"].shape[1]
    sem_p = arrays["wsem"].shape[1]
    ncls_p = arrays["smat"].shape[1]

    # Free, contiguous reshape: no transpose, no pad, no dtype cast over x.
    x3 = x.reshape(n, c, hw)
    itemsize = jnp.dtype(x3.dtype).itemsize

    tm = _pick_tile_m(n, c, hw, itemsize, requested=tile_m)
    grid = (pl.cdiv(n, tm),)
    n_pad = grid[0] * tm   # output rows rounded up; last input block is partial

    # Explicit VMEM budget (covers v5e's 16 MiB scoped default; stays well inside
    # v7x's 64 MiB/TC physical limit).
    x_block = _block_vmem_bytes(tm, c, hw, itemsize)
    resident = 4 * sum(a.size for a in arrays.values())
    out_bufs = 2 * tm * (ncls_p + out_reg_p) * 4
    vmem_limit = min(max(int((2 * x_block + resident + out_bufs) * 1.25) + (2 << 20),
                         32 << 20), 64 << 20)

    resident_vmem = pl.BlockSpec(memory_space=pltpu.MemorySpace.VMEM)

    sem_pad, bbox_pad = pl.pallas_call(
        _head_kernel,
        out_shape=(
            jax.ShapeDtypeStruct((n_pad, ncls_p), jnp.float32),
            jax.ShapeDtypeStruct((n_pad, out_reg_p), jnp.float32),
        ),
        grid_spec=pltpu.PrefetchScalarGridSpec(
            num_scalar_prefetch=0,
            grid=grid,
            in_specs=[
                pl.BlockSpec((tm, c, hw), lambda i: (i, 0, 0)),   # x tile (pipelined)
                resident_vmem,                                    # wreg
                resident_vmem,                                    # breg
                resident_vmem,                                    # wsem
                resident_vmem,                                    # bsem
                resident_vmem,                                    # smat
            ],
            out_specs=[
                pl.BlockSpec((tm, ncls_p), lambda i: (i, 0)),
                pl.BlockSpec((tm, out_reg_p), lambda i: (i, 0)),
            ],
        ),
        compiler_params=pltpu.CompilerParams(
            dimension_semantics=("parallel",),
            vmem_limit_bytes=vmem_limit,
        ),
    )(x3, arrays["wreg"], arrays["breg"], arrays["wsem"], arrays["bsem"],
      arrays["smat"])

    # Rows [n, n_pad) come from the partial last block (undefined inputs) and are
    # sliced off; padded output columns are zero / garbage-free slices.
    return (sem_pad[:n, :meta["num_classes"]], bbox_pad[:n, :meta["out_reg"]])


# ----------------------------------------------------------------------------
# Params / reference
# ----------------------------------------------------------------------------
def init_params(key, in_channels, num_classes, semantic_dims, voc_cols):
    """Synthetic parameters, shapes per BBoxSemanticHead.__init__
    (with_avg_pool=True, reg_class_agnostic=False, voc provided)."""
    ks = jax.random.split(key, 5)
    std = 0.001  # matches init_weights(): normal_(w, 0, 0.001), bias = 0
    return {
        "fc_reg_w": std * jax.random.normal(ks[0], (4 * num_classes, in_channels), jnp.float32),
        "fc_reg_b": jnp.zeros((4 * num_classes,), jnp.float32),
        "fc_semantic_w": std * jax.random.normal(ks[1], (semantic_dims, in_channels), jnp.float32),
        "fc_semantic_b": jnp.zeros((semantic_dims,), jnp.float32),
        # kernel_semantic: Linear(voc.shape[1], vec.shape[0])
        "kernel_semantic_w": std * jax.random.normal(ks[2], (semantic_dims, voc_cols), jnp.float32),
        "kernel_semantic_b": jnp.zeros((semantic_dims,), jnp.float32),
        # synthetic word-vector tables (would come from voc_path / vec_path files)
        "voc": jax.random.normal(ks[3], (semantic_dims, voc_cols), jnp.float32),
        "vec": jax.random.normal(ks[4], (semantic_dims, num_classes), jnp.float32),
    }


def reference_forward(x, params):
    """Pure-JAX f32 reference mirroring the PyTorch forward."""
    xp = jnp.mean(x, axis=(2, 3))  # avg pool -> (N, C)
    bbox_pred = xp @ params["fc_reg_w"].T + params["fc_reg_b"]
    semantic_feature = xp @ params["fc_semantic_w"].T + params["fc_semantic_b"]
    kv = params["voc"] @ params["kernel_semantic_w"].T + params["kernel_semantic_b"]
    score_mat = jnp.tanh(kv @ params["vec"])
    semantic_score = semantic_feature @ score_mat
    return semantic_score, bbox_pred


if __name__ == "__main__":
    # Small shapes consistent with the module defaults (in_channels=256,
    # roi_feat_size=7, num_classes=66, semantic_dims=300), scaled down.
    # N=13 exercises the partial-last-block path (grid of 2 steps at tile_m=8).
    N, C, H, W = 13, 128, 7, 7
    num_classes = 16
    semantic_dims = 32
    voc_cols = 64

    key = jax.random.PRNGKey(0)
    kx, kp = jax.random.split(key)
    x = jax.random.normal(kx, (N, C, H, W), jnp.float32)
    params = init_params(kp, C, num_classes, semantic_dims, voc_cols)

    # One-time, N-independent prep (would be cached at model load).
    arrays, meta = prepare_head_params(params, roi_feat_size=(H, W))
    arrays = jax.tree_util.tree_map(jax.block_until_ready, arrays)

    sem, bbox = bbox_semantic_head_forward(x, arrays, meta)
    sem = jax.block_until_ready(sem)
    bbox = jax.block_until_ready(bbox)

    sem_ref, bbox_ref = reference_forward(x, params)
    assert sem.shape == (N, num_classes) and bbox.shape == (N, 4 * num_classes)
    assert jnp.allclose(sem, sem_ref, atol=2e-4, rtol=1e-2), float(
        jnp.max(jnp.abs(sem - sem_ref))
    )
    assert jnp.allclose(bbox, bbox_ref, atol=2e-4, rtol=1e-2), float(
        jnp.max(jnp.abs(bbox - bbox_ref))
    )

    print("KERNEL_OK")
</pallas_src>

<mosaic_0001>
module attributes {stable_mosaic.version = 11 : i64} {
  func.func @_head_kernel(%arg0: i32, %arg1: memref<8x128x49xf32, #tpu.memory_space<vmem>>, %arg2: memref<128x128xf32, #tpu.memory_space<vmem>>, %arg3: memref<1x128xf32, #tpu.memory_space<vmem>>, %arg4: memref<128x128xf32, #tpu.memory_space<vmem>>, %arg5: memref<1x128xf32, #tpu.memory_space<vmem>>, %arg6: memref<128x128xf32, #tpu.memory_space<vmem>>, %arg7: memref<8x128xf32, #tpu.memory_space<vmem>>, %arg8: memref<8x128xf32, #tpu.memory_space<vmem>>) attributes {dimension_semantics = [#tpu.dimension_semantics<parallel>], iteration_bounds = array<i64: 2>, scalar_prefetch = 0 : i64, scratch_operands = 0 : i64, tpu.core_type = #tpu.core_type<tc>, window_params = [{transform_indices = @transform_0, window_bounds = array<i64: 8, 128, 49>}, {pipeline_mode = #tpu.pipeline_mode<synchronous>, transform_indices = @transform_1, window_bounds = array<i64: 128, 128>}, {pipeline_mode = #tpu.pipeline_mode<synchronous>, transform_indices = @transform_2, window_bounds = array<i64: 1, 128>}, {pipeline_mode = #tpu.pipeline_mode<synchronous>, transform_indices = @transform_3, window_bounds = array<i64: 128, 128>}, {pipeline_mode = #tpu.pipeline_mode<synchronous>, transform_indices = @transform_4, window_bounds = array<i64: 1, 128>}, {pipeline_mode = #tpu.pipeline_mode<synchronous>, transform_indices = @transform_5, window_bounds = array<i64: 128, 128>}, {transform_indices = @transform_6, window_bounds = array<i64: 8, 128>}, {transform_indices = @transform_7, window_bounds = array<i64: 8, 128>}]} {
    %c0 = arith.constant 0 : index
    %c0_0 = arith.constant 0 : index
    %c0_1 = arith.constant 0 : index
    %0 = vector.load %arg1[%c0, %c0_0, %c0_1] : memref<8x128x49xf32, #tpu.memory_space<vmem>>, vector<8x128x49xf32>
    %cst = arith.constant dense<0.000000e+00> : vector<8x128xf32>
    %1 = vector.multi_reduction <add>, %0, %cst [2] : vector<8x128x49xf32> to vector<8x128xf32>
    %c0_2 = arith.constant 0 : index
    %c0_3 = arith.constant 0 : index
    %2 = vector.load %arg2[%c0_2, %c0_3] : memref<128x128xf32, #tpu.memory_space<vmem>>, vector<128x128xf32>
    %cst_4 = arith.constant dense<0.000000e+00> : vector<8x128xf32>
    %3 = tpu.matmul %1, %2, %cst_4 {dimension_numbers = #tpu.dot_dimension_numbers<[1], [0], [0], [1], [0, 0, 1, 1], [], []>} : vector<8x128xf32>, vector<128x128xf32>, vector<8x128xf32> -> vector<8x128xf32>
    %c0_5 = arith.constant 0 : index
    %c0_6 = arith.constant 0 : index
    %4 = vector.load %arg3[%c0_5, %c0_6] : memref<1x128xf32, #tpu.memory_space<vmem>>, vector<1x128xf32>
    %5 = vector.broadcast %4 : vector<1x128xf32> to vector<8x128xf32>
    %6 = arith.addf %3, %5 : vector<8x128xf32>
    %c0_7 = arith.constant 0 : index
    %c0_8 = arith.constant 0 : index
    %7 = vector.load %arg8[%c0_7, %c0_8] : memref<8x128xf32, #tpu.memory_space<vmem>>, vector<8x128xf32>
    tpu.vector_store %arg8[%c0_7, %c0_8], %6 {strides = array<i32>} : memref<8x128xf32, #tpu.memory_space<vmem>>, vector<8x128xf32>,
    %c0_9 = arith.constant 0 : index
    %c0_10 = arith.constant 0 : index
    %8 = vector.load %arg4[%c0_9, %c0_10] : memref<128x128xf32, #tpu.memory_space<vmem>>, vector<128x128xf32>
    %cst_11 = arith.constant dense<0.000000e+00> : vector<8x128xf32>
    %9 = tpu.matmul %1, %8, %cst_11 {dimension_numbers = #tpu.dot_dimension_numbers<[1], [0], [0], [1], [0, 0, 1, 1], [], []>} : vector<8x128xf32>, vector<128x128xf32>, vector<8x128xf32> -> vector<8x128xf32>
    %c0_12 = arith.constant 0 : index
    %c0_13 = arith.constant 0 : index
    %10 = vector.load %arg5[%c0_12, %c0_13] : memref<1x128xf32, #tpu.memory_space<vmem>>, vector<1x128xf32>
    %11 = vector.broadcast %10 : vector<1x128xf32> to vector<8x128xf32>
    %12 = arith.addf %9, %11 : vector<8x128xf32>
    %c0_14 = arith.constant 0 : index
    %c0_15 = arith.constant 0 : index
    %13 = vector.load %arg6[%c0_14, %c0_15] : memref<128x128xf32, #tpu.memory_space<vmem>>, vector<128x128xf32>
    %cst_16 = arith.constant dense<0.000000e+00> : vector<8x128xf32>
    %14 = tpu.matmul %12, %13, %cst_16 {dimension_numbers = #tpu.dot_dimension_numbers<[1], [0], [0], [1], [0, 0, 1, 1], [], []>} : vector<8x128xf32>, vector<128x128xf32>, vector<8x128xf32> -> vector<8x128xf32>
    %c0_17 = arith.constant 0 : index
    %c0_18 = arith.constant 0 : index
    %15 = vector.load %arg7[%c0_17, %c0_18] : memref<8x128xf32, #tpu.memory_space<vmem>>, vector<8x128xf32>
    tpu.vector_store %arg7[%c0_17, %c0_18], %14 {strides = array<i32>} : memref<8x128xf32, #tpu.memory_space<vmem>>, vector<8x128xf32>,
    return
  }
  func.func @transform_0(%arg0: i32) -> (i32, i32, i32) {
    %c0_i32 = arith.constant 0 : i32
    %c0_i32_0 = arith.constant 0 : i32
    %c0_i32_1 = arith.constant 0 : i32
    return %arg0, %c0_i32, %c0_i32_0 : i32, i32, i32
  }
  func.func @transform_1(%arg0: i32) -> (i32, i32) {
    %c0_i32 = arith.constant 0 : i32
    %c0_i32_0 = arith.constant 0 : i32
    %c0_i32_1 = arith.constant 0 : i32
    return %c0_i32, %c0_i32_0 : i32, i32
  }
  func.func @transform_2(%arg0: i32) -> (i32, i32) {
    %c0_i32 = arith.constant 0 : i32
    %c0_i32_0 = arith.constant 0 : i32
    %c0_i32_1 = arith.constant 0 : i32
    return %c0_i32, %c0_i32_0 : i32, i32
  }
  func.func @transform_3(%arg0: i32) -> (i32, i32) {
    %c0_i32 = arith.constant 0 : i32
    %c0_i32_0 = arith.constant 0 : i32
    %c0_i32_1 = arith.constant 0 : i32
    return %c0_i32, %c0_i32_0 : i32, i32
  }
  func.func @transform_4(%arg0: i32) -> (i32, i32) {
    %c0_i32 = arith.constant 0 : i32
    %c0_i32_0 = arith.constant 0 : i32
    %c0_i32_1 = arith.constant 0 : i32
    return %c0_i32, %c0_i32_0 : i32, i32
  }
  func.func @transform_5(%arg0: i32) -> (i32, i32) {
    %c0_i32 = arith.constant 0 : i32
    %c0_i32_0 = arith.constant 0 : i32
    %c0_i32_1 = arith.constant 0 : i32
    return %c0_i32, %c0_i32_0 : i32, i32
  }
  func.func @transform_6(%arg0: i32) -> (i32, i32) {
    %c0_i32 = arith.constant 0 : i32
    %c0_i32_0 = arith.constant 0 : i32
    return %arg0, %c0_i32 : i32, i32
  }
  func.func @transform_7(%arg0: i32) -> (i32, i32) {
    %c0_i32 = arith.constant 0 : i32
    %c0_i32_0 = arith.constant 0 : i32
    return %arg0, %c0_i32 : i32, i32
  }
}

</mosaic_0001>

<llo_original>
// kernel: tpu_custom_call.1
$region0: #{tpu_custom_call.1}
  #allocation0 [shape = 'u32[]', space=smem, size = 0x4, offset = 0x4, fixed_abs, tag = 'smem constant byte address 0x4 - core index']
  #allocation1 [shape = 'u32[72,128]{1,0:T(1,128)}', space=vmem, size = 0x9000, scoped, tag = 'internal scratch']
  %s0 = inlined_call_operand.vmem [shape: f32[13,128,49], index: 0, kind: input, shape index: {}]
  %s1 = inlined_call_operand.vmem [shape: f32[128,128], index: 1, kind: input, shape index: {}]
  %s2 = inlined_call_operand.vmem [shape: f32[1,128], index: 2, kind: input, shape index: {}]
  %s3 = inlined_call_operand.vmem [shape: f32[128,128], index: 3, kind: input, shape index: {}]
  %s4 = inlined_call_operand.vmem [shape: f32[1,128], index: 4, kind: input, shape index: {}]
  %s5 = inlined_call_operand.vmem [shape: f32[128,128], index: 5, kind: input, shape index: {}]
  %s6 = inlined_call_operand.hbm [shape: f32[16,128], index: 6, kind: output, shape index: {0}]
  %s7 = inlined_call_operand.hbm [shape: f32[16,128], index: 7, kind: output, shape index: {1}]
  %8 = xla_tuple %s6, %s7
  %s9 = sld [smem:[#allocation0]]
  $region65: #{tpu_custom_call.1} parent=0
    _
  %s11 = ssub.s32 1, %s9
  %s12 = scalar_select 0, %s11, %s9
  $region1: #{tpu_custom_call.1} parent=0
    #allocation2 [shape = 'u8[8192]{0}', space=vmem, size = 0x2000, scoped, tag = 'output window, operand 0']
    #allocation3 [shape = 's32[2]{0}', space=sflag, size = 0x8, scoped, tag = 'scoped memory for tpu_custom_call.1']
    #allocation4 [shape = 'u8[8192]{0}', space=vmem, size = 0x2000, scoped, tag = 'output window, operand 1']
    #allocation5 [shape = 's32[2]{0}', space=sflag, size = 0x8, scoped, tag = 'scoped memory for tpu_custom_call.1']
    %13 = vsyncpa [#allocation3], 0
    %s14 = scalar_lea.sflag [#allocation3], 1
    %15 = vsyncpa %s14, 0
    %16 = vsyncpa [#allocation5], 0
    %s17 = scalar_lea.sflag [#allocation5], 1
    %18 = vsyncpa %s17, 0
    loop: start=0, step=1, limit=4
    $region2: #{tpu_custom_call.1} parent=1 // loop_pre_header
      _
    $region3: #{tpu_custom_call.1} parent=1 // loop_header
      %s20 = sphi 0, %s24
      %p21 = scmp.ge.s32.totalorder %s20, 4
      %s30 = sphi 0, %s32
      %s33 = sphi 0, %s30
      %s34 = sphi 0, %s33
      %s50 = sphi 0, %s34
      %s54 = sphi 0, %s54
      %s56 = sphi 0, %s54
      %s57 = sphi 0, %s56
      %s71 = sphi 0, %s57
      %s75 = sphi 0, %s75
      %s77 = sphi 0, %s75
      %s78 = sphi 0, %s77
      %s92 = sphi 0, %s78
      %s96 = sphi 0, %s96
      %s98 = sphi 0, %s96
      %s99 = sphi 0, %s98
      %s113 = sphi 0, %s99
      %s117 = sphi 0, %s117
      %s119 = sphi 0, %s117
      %s120 = sphi 0, %s119
      %s134 = sphi 0, %s120
      %s138 = sphi 0, %s138
      %s140 = sphi 0, %s138
      %s141 = sphi 0, %s140
      %s155 = sphi 0, %s141
      %s161 = sphi 0, %s163
      %s164 = sphi 0, %s161
      %s165 = sphi 0, %s164
      %s181 = sphi 0, %s165
      %s187 = sphi 0, %s189
      %s190 = sphi 0, %s187
      %s191 = sphi 0, %s190
      %s207 = sphi 0, %s191
    $region4: #{tpu_custom_call.1} parent=1 // loop_header_branch
      %23 = sbr.rel (%p21) target = $region8
    $region5: #{tpu_custom_call.1} parent=1 // loop_body
      %s25 = ssub.s32 %s20, 1
      %s26 = ssub.s32 %s20, 2
      %s27 = sadd.s32 %s20, 1
      %s28 = ssub.s32 %s20, %s27
      %p29 = scmp.eq.s32.totalorder %s28, 0
      %s31 = sadd.s32 %s30, 1
      %s32 = scalar_select %p29, %s30, %s31
      %p35 = pneg %p29
      %p36 = scmp.eq.s32.totalorder %s20, 1
      %p37 = por %p35, %p36
      %p38 = scmp.ne.s32.totalorder %s30, %s33
      %p39 = scmp.eq.s32.totalorder %s20, 0
      %p40 = por %p38, %p39
      %p41 = scmp.ne.s32.totalorder %s30, %s33
      %p42 = scmp.eq.s32.totalorder %s25, 1
      %p43 = por %p41, %p42
      %p44 = scmp.ne.s32.totalorder %s33, %s34
      %p45 = scmp.eq.s32.totalorder %s25, 0
      %p46 = por %p44, %p45
      %p47 = scmp.ne.s32.totalorder %s33, %s34
      %p48 = scmp.eq.s32.totalorder %s26, 1
      %p49 = por %p47, %p48
      %p51 = scmp.ne.s32.totalorder %s34, %s50
      %p52 = scmp.eq.s32.totalorder %s26, 0
      %p53 = por %p51, %p52
      %s55 = sadd.s32 %s54, 1
      %p58 = scmp.eq.s32.totalorder %s20, 1
      %p59 = scmp.ne.s32.totalorder %s54, %s56
      %p60 = scmp.eq.s32.totalorder %s20, 0
      %p61 = por %p59, %p60
      %p62 = scmp.ne.s32.totalorder %s54, %s56
      %p63 = scmp.eq.s32.totalorder %s25, 1
      %p64 = por %p62, %p63
      %p65 = scmp.ne.s32.totalorder %s56, %s57
      %p66 = scmp.eq.s32.totalorder %s25, 0
      %p67 = por %p65, %p66
      %p68 = scmp.ne.s32.totalorder %s56, %s57
      %p69 = scmp.eq.s32.totalorder %s26, 1
      %p70 = por %p68, %p69
      %p72 = scmp.ne.s32.totalorder %s57, %s71
      %p73 = scmp.eq.s32.totalorder %s26, 0
      %p74 = por %p72, %p73
      %s76 = sadd.s32 %s75, 1
      %p79 = scmp.eq.s32.totalorder %s20, 1
      %p80 = scmp.ne.s32.totalorder %s75, %s77
      %p81 = scmp.eq.s32.totalorder %s20, 0
      %p82 = por %p80, %p81
      %p83 = scmp.ne.s32.totalorder %s75, %s77
      %p84 = scmp.eq.s32.totalorder %s25, 1
      %p85 = por %p83, %p84
      %p86 = scmp.ne.s32.totalorder %s77, %s78
      %p87 = scmp.eq.s32.totalorder %s25, 0
      %p88 = por %p86, %p87
      %p89 = scmp.ne.s32.totalorder %s77, %s78
      %p90 = scmp.eq.s32.totalorder %s26, 1
      %p91 = por %p89, %p90
      %p93 = scmp.ne.s32.totalorder %s78, %s92
      %p94 = scmp.eq.s32.totalorder %s26, 0
      %p95 = por %p93, %p94
      %s97 = sadd.s32 %s96, 1
      %p100 = scmp.eq.s32.totalorder %s20, 1
      %p101 = scmp.ne.s32.totalorder %s96, %s98
      %p102 = scmp.eq.s32.totalorder %s20, 0
      %p103 = por %p101, %p102
      %p104 = scmp.ne.s32.totalorder %s96, %s98
      %p105 = scmp.eq.s32.totalorder %s25, 1
      %p106 = por %p104, %p105
      %p107 = scmp.ne.s32.totalorder %s98, %s99
      %p108 = scmp.eq.s32.totalorder %s25, 0
      %p109 = por %p107, %p108
      %p110 = scmp.ne.s32.totalorder %s98, %s99
      %p111 = scmp.eq.s32.totalorder %s26, 1
      %p112 = por %p110, %p111
      %p114 = scmp.ne.s32.totalorder %s99, %s113
      %p115 = scmp.eq.s32.totalorder %s26, 0
      %p116 = por %p114, %p115
      %s118 = sadd.s32 %s117, 1
      %p121 = scmp.eq.s32.totalorder %s20, 1
      %p122 = scmp.ne.s32.totalorder %s117, %s119
      %p123 = scmp.eq.s32.totalorder %s20, 0
      %p124 = por %p122, %p123
      %p125 = scmp.ne.s32.totalorder %s117, %s119
      %p126 = scmp.eq.s32.totalorder %s25, 1
      %p127 = por %p125, %p126
      %p128 = scmp.ne.s32.totalorder %s119, %s120
      %p129 = scmp.eq.s32.totalorder %s25, 0
      %p130 = por %p128, %p129
      %p131 = scmp.ne.s32.totalorder %s119, %s120
      %p132 = scmp.eq.s32.totalorder %s26, 1
      %p133 = por %p131, %p132
      %p135 = scmp.ne.s32.totalorder %s120, %s134
      %p136 = scmp.eq.s32.totalorder %s26, 0
      %p137 = por %p135, %p136
      %s139 = sadd.s32 %s138, 1
      %p142 = scmp.eq.s32.totalorder %s20, 1
      %p143 = scmp.ne.s32.totalorder %s138, %s140
      %p144 = scmp.eq.s32.totalorder %s20, 0
      %p145 = por %p143, %p144
      %p146 = scmp.ne.s32.totalorder %s138, %s140
      %p147 = scmp.eq.s32.totalorder %s25, 1
      %p148 = por %p146, %p147
      %p149 = scmp.ne.s32.totalorder %s140, %s141
      %p150 = scmp.eq.s32.totalorder %s25, 0
      %p151 = por %p149, %p150
      %p152 = scmp.ne.s32.totalorder %s140, %s141
      %p153 = scmp.eq.s32.totalorder %s26, 1
      %p154 = por %p152, %p153
      %p156 = scmp.ne.s32.totalorder %s141, %s155
      %p157 = scmp.eq.s32.totalorder %s26, 0
      %p158 = por %p156, %p157
      %s159 = ssub.s32 %s20, %s27
      %p160 = scmp.eq.s32.totalorder %s159, 0
      %s162 = sadd.s32 %s161, 1
      %s163 = scalar_select %p160, %s161, %s162
      %p166 = pneg %p160
      %p167 = scmp.eq.s32.totalorder %s20, 1
      %p168 = por %p166, %p167
      %p169 = scmp.ne.s32.totalorder %s161, %s164
      %p170 = scmp.eq.s32.totalorder %s20, 0
      %p171 = por %p169, %p170
      %p172 = scmp.ne.s32.totalorder %s161, %s164
      %p173 = scmp.eq.s32.totalorder %s25, 1
      %p174 = por %p172, %p173
      %p175 = scmp.ne.s32.totalorder %s164, %s165
      %p176 = scmp.eq.s32.totalorder %s25, 0
      %p177 = por %p175, %p176
      %p178 = scmp.ne.s32.totalorder %s164, %s165
      %p179 = scmp.eq.s32.totalorder %s26, 1
      %p180 = por %p178, %p179
      %p182 = scmp.ne.s32.totalorder %s165, %s181
      %p183 = scmp.eq.s32.totalorder %s26, 0
      %p184 = por %p182, %p183
      %s185 = ssub.s32 %s20, %s27
      %p186 = scmp.eq.s32.totalorder %s185, 0
      %s188 = sadd.s32 %s187, 1
      %s189 = scalar_select %p186, %s187, %s188
      %p192 = pneg %p186
      %p193 = scmp.eq.s32.totalorder %s20, 1
      %p194 = por %p192, %p193
      %p195 = scmp.ne.s32.totalorder %s187, %s190
      %p196 = scmp.eq.s32.totalorder %s20, 0
      %p197 = por %p195, %p196
      %p198 = scmp.ne.s32.totalorder %s187, %s190
      %p199 = scmp.eq.s32.totalorder %s25, 1
      %p200 = por %p198, %p199
      %p201 = scmp.ne.s32.totalorder %s190, %s191
      %p202 = scmp.eq.s32.totalorder %s25, 0
      %p203 = por %p201, %p202
      %p204 = scmp.ne.s32.totalorder %s190, %s191
      %p205 = scmp.eq.s32.totalorder %s26, 1
      %p206 = por %p204, %p205
      %p208 = scmp.ne.s32.totalorder %s191, %s207
      %p209 = scmp.eq.s32.totalorder %s26, 0
      %p210 = por %p208, %p209
      %p211 = scmp.le.s32.totalorder 1, %s20
      %p212 = scmp.lt.s32.totalorder %s20, 3
      %p213 = pnand %p211, %p212
      %p214 = pneg %p213
      // Predicated region
      $region9: #{tpu_custom_call.1} parent=5 // pred_check
        _
      $region10: #{tpu_custom_call.1} parent=5 // pred_check_branch
        %216 = sbr.rel (%p213) target = $region12
      $region11: #{tpu_custom_call.1} parent=5 // pred_region
        %s217 = ssub.s32 %s20, 1
        // Predicated region
        $region13: #{tpu_custom_call.1} parent=11 // pred_check
          %p218 = pneg %p67
        $region14: #{tpu_custom_call.1} parent=11 // pred_check_branch
          %220 = sbr.rel (%p218) target = $region16
        $region15: #{tpu_custom_call.1} parent=11 // pred_region
          _
        $region16: #{tpu_custom_call.1} parent=11 // pred_fallthru
          _
        // Predicated region
        $region17: #{tpu_custom_call.1} parent=11 // pred_check
          %p221 = pneg %p88
        $region18: #{tpu_custom_call.1} parent=11 // pred_check_branch
          %223 = sbr.rel (%p221) target = $region20
        $region19: #{tpu_custom_call.1} parent=11 // pred_region
          _
        $region20: #{tpu_custom_call.1} parent=11 // pred_fallthru
          _
        // Predicated region
        $region21: #{tpu_custom_call.1} parent=11 // pred_check
          %p224 = pneg %p109
        $region22: #{tpu_custom_call.1} parent=11 // pred_check_branch
          %226 = sbr.rel (%p224) target = $region24
        $region23: #{tpu_custom_call.1} parent=11 // pred_region
          _
        $region24: #{tpu_custom_call.1} parent=11 // pred_fallthru
          _
        // Predicated region
        $region25: #{tpu_custom_call.1} parent=11 // pred_check
          %p227 = pneg %p130
        $region26: #{tpu_custom_call.1} parent=11 // pred_check_branch
          %229 = sbr.rel (%p227) target = $region28
        $region27: #{tpu_custom_call.1} parent=11 // pred_region
          _
        $region28: #{tpu_custom_call.1} parent=11 // pred_fallthru
          _
        // Predicated region
        $region29: #{tpu_custom_call.1} parent=11 // pred_check
          %p230 = pneg %p151
        $region30: #{tpu_custom_call.1} parent=11 // pred_check_branch
          %232 = sbr.rel (%p230) target = $region32
        $region31: #{tpu_custom_call.1} parent=11 // pred_region
          _
        $region32: #{tpu_custom_call.1} parent=11 // pred_fallthru
          _
      $region12: #{tpu_custom_call.1} parent=5 // pred_fallthru
        _
      %p233 = scmp.lt.s32.totalorder %s20, 2
      // Predicated region
      $region33: #{tpu_custom_call.1} parent=5 // pred_check
        %p234 = pneg %p233
      $region34: #{tpu_custom_call.1} parent=5 // pred_check_branch
        %236 = sbr.rel (%p234) target = $region36
      $region35: #{tpu_custom_call.1} parent=5 // pred_region
        // Predicated region
        $region37: #{tpu_custom_call.1} parent=35 // pred_check
          %p237 = pneg %p40
        $region38: #{tpu_custom_call.1} parent=35 // pred_check_branch
          %239 = sbr.rel (%p237) target = $region40
        $region39: #{tpu_custom_call.1} parent=35 // pred_region
          %s240 = smul.u32 8, %s20
          %s241 = ssub.s32 13, %s240
          %p242 = scmp.lt.s32.totalorder %s241, 8
          %s243 = scalar_select %p242, %s241, 8
          %s244 = smul.u32 8, %s243
          %s245 = smul.u32 %s244, 16
          %p246 = scmp.lt.s32.totalorder %s240, 12
          %s247 = scalar_select %p246, %s240, 12
          %s248 = smul.addr %s247, 16
          %s249 = smul.addr %s248, 8
          %s250 = scalar_lea.vmem %s0, %s249
          %s251 = smul.u32 8, %s20
          %s252 = ssub.s32 13, %s251
          %p253 = scmp.lt.s32.totalorder %s252, 8
          %s254 = scalar_select %p253, %s252, 8
          %s255 = smul.u32 8, %s254
          %s256 = smul.u32 %s255, 16
        $region40: #{tpu_custom_call.1} parent=35 // pred_fallthru
          _
      $region36: #{tpu_custom_call.1} parent=5 // pred_fallthru
        _
      %p257 = scmp.le.s32.totalorder 1, %s20
      %p258 = scmp.lt.s32.totalorder %s20, 3
      %p259 = pnand %p257, %p258
      %p260 = pneg %p259
      // Predicated region
      $region41: #{tpu_custom_call.1} parent=5 // pred_check
        _
      $region42: #{tpu_custom_call.1} parent=5 // pred_check_branch
        %262 = sbr.rel (%p259) target = $region44
      $region43: #{tpu_custom_call.1} parent=5 // pred_region
        %s263 = ssub.s32 %s20, 1
        %s264 = smul.u32 8, %s25
        %s265 = ssub.s32 13, %s264
        %p266 = scmp.lt.s32.totalorder %s265, 8
        %s267 = scalar_select %p266, %s265, 8
        %s268 = smul.u32 8, %s267
        %s269 = smul.u32 %s268, 16
        %p270 = scmp.lt.s32.totalorder %s264, 12
        %s271 = scalar_select %p270, %s264, 12
        %s272 = smul.addr %s271, 16
        %s273 = smul.addr %s272, 8
        %s274 = scalar_lea.vmem %s0, %s273
        %p275 = pneg %p46
        %p276 = pneg %p43
        %p277 = pneg %p67
        %p278 = pneg %p64
        %p279 = pneg %p88
        %p280 = pneg %p85
        %p281 = pneg %p109
        %p282 = pneg %p106
        %p283 = pneg %p130
        %p284 = pneg %p127
        %p285 = pneg %p151
        %p286 = pneg %p148
        %p287 = pneg %p177
        %p288 = pneg %p174
        %s289 = sand.u32 %s164, 1
        %s290 = scalar_lea.sflag [#allocation3], %s289
        %s291 = sand.u32 %s164, 1
        %s292 = smul.addr %s291, 8
        %s293 = scalar_lea.vmem [#allocation2], %s292
        %p294 = pneg %p203
        %p295 = pneg %p200
        %s296 = sand.u32 %s190, 1
        %s297 = scalar_lea.sflag [#allocation5], %s296
        %s298 = sand.u32 %s190, 1
        %s299 = smul.addr %s298, 8
        %s300 = scalar_lea.vmem [#allocation4], %s299
        %s301 = smul.u32 8, %s25
        %s302 = ssub.s32 13, %s301
        %p303 = scmp.lt.s32.totalorder %s302, 8
        %s304 = scalar_select %p303, %s302, 8
        %s305 = smul.u32 8, %s304
        %s306 = smul.u32 %s305, 16
        %p307 = scmp.lt.s32.totalorder %s301, 12
        %s308 = scalar_select %p307, %s301, 12
        %s309 = smul.addr %s308, 16
        %s310 = smul.addr %s309, 8
        %s311 = scalar_lea.vmem %s0, %s310
        %s312 = smul.u32 8, %s25
        %s313 = ssub.s32 13, %s312
        %p314 = scmp.lt.s32.totalorder %s313, 8
        %s315 = scalar_select %p314, %s313, 8
        %s316 = smul.u32 8, %s315
        %s317 = smul.u32 %s316, 16
        %v318 = vld [vmem:[%s311] sm:$0xff]
        %v319 = vld [vmem:[%s311 + $0x8] sm:$0xff]
        %v320 = vld [vmem:[%s311 + $0x10] sm:$0xff]
        %v321 = vld [vmem:[%s311 + $0x18] sm:$0xff]
        %v322 = vld [vmem:[%s311 + $0x20] sm:$0xff]
        %v323 = vld [vmem:[%s311 + $0x28] sm:$0xff]
        %v324 = vld [vmem:[%s311 + $0x30] sm:$0xff]
        %v325 = vld [vmem:[%s311 + $0x38] sm:$0xff]
        %v326 = vld [vmem:[%s311 + $0x40] sm:$0xff]
        %v327 = vld [vmem:[%s311 + $0x48] sm:$0xff]
        %v328 = vld [vmem:[%s311 + $0x50] sm:$0xff]
        %v329 = vld [vmem:[%s311 + $0x58] sm:$0xff]
        %v330 = vld [vmem:[%s311 + $0x60] sm:$0xff]
        %v331 = vld [vmem:[%s311 + $0x68] sm:$0xff]
        %v332 = vld [vmem:[%s311 + $0x70] sm:$0xff]
        %v333 = vld [vmem:[%s311 + $0x78] sm:$0xff]
        %v334 = vld [vmem:[%s311 + $0x80] sm:$0xff]
        %v335 = vld [vmem:[%s311 + $0x88] sm:$0xff]
        %v336 = vld [vmem:[%s311 + $0x90] sm:$0xff]
        %v337 = vld [vmem:[%s311 + $0x98] sm:$0xff]
        %v338 = vld [vmem:[%s311 + $0xa0] sm:$0xff]
        %v339 = vld [vmem:[%s311 + $0xa8] sm:$0xff]
        %v340 = vld [vmem:[%s311 + $0xb0] sm:$0xff]
        %v341 = vld [vmem:[%s311 + $0xb8] sm:$0xff]
        %v342 = vld [vmem:[%s311 + $0xc0] sm:$0xff]
        %v343 = vld [vmem:[%s311 + $0xc8] sm:$0xff]
        %v344 = vld [vmem:[%s311 + $0xd0] sm:$0xff]
        %v345 = vld [vmem:[%s311 + $0xd8] sm:$0xff]
        %v346 = vld [vmem:[%s311 + $0xe0] sm:$0xff]
        %v347 = vld [vmem:[%s311 + $0xe8] sm:$0xff]
        %v348 = vld [vmem:[%s311 + $0xf0] sm:$0xff]
        %v349 = vld [vmem:[%s311 + $0xf8] sm:$0xff]
        %v350 = vld [vmem:[%s311 + $0x100] sm:$0xff]
        %v351 = vld [vmem:[%s311 + $0x108] sm:$0xff]
        %v352 = vld [vmem:[%s311 + $0x110] sm:$0xff]
        %v353 = vld [vmem:[%s311 + $0x118] sm:$0xff]
        %v354 = vld [vmem:[%s311 + $0x120] sm:$0xff]
        %v355 = vld [vmem:[%s311 + $0x128] sm:$0xff]
        %v356 = vld [vmem:[%s311 + $0x130] sm:$0xff]
        %v357 = vld [vmem:[%s311 + $0x138] sm:$0xff]
        %v358 = vld [vmem:[%s311 + $0x140] sm:$0xff]
        %v359 = vld [vmem:[%s311 + $0x148] sm:$0xff]
        %v360 = vld [vmem:[%s311 + $0x150] sm:$0xff]
        %v361 = vld [vmem:[%s311 + $0x158] sm:$0xff]
        %v362 = vld [vmem:[%s311 + $0x160] sm:$0xff]
        %v363 = vld [vmem:[%s311 + $0x168] sm:$0xff]
        %v364 = vld [vmem:[%s311 + $0x170] sm:$0xff]
        %v365 = vld [vmem:[%s311 + $0x178] sm:$0xff]
        %v366 = vld [vmem:[%s311 + $0x180] sm:$0xff]
        %v367 = vld [vmem:[%s311 + $0x188] sm:$0xff]
        %v368 = vld [vmem:[%s311 + $0x190] sm:$0xff]
        %v369 = vld [vmem:[%s311 + $0x198] sm:$0xff]
        %v370 = vld [vmem:[%s311 + $0x1a0] sm:$0xff]
        %v371 = vld [vmem:[%s311 + $0x1a8] sm:$0xff]
        %v372 = vld [vmem:[%s311 + $0x1b0] sm:$0xff]
        %v373 = vld [vmem:[%s311 + $0x1b8] sm:$0xff]
        %v374 = vld [vmem:[%s311 + $0x1c0] sm:$0xff]
        %v375 = vld [vmem:[%s311 + $0x1c8] sm:$0xff]
        %v376 = vld [vmem:[%s311 + $0x1d0] sm:$0xff]
        %v377 = vld [vmem:[%s311 + $0x1d8] sm:$0xff]
        %v378 = vld [vmem:[%s311 + $0x1e0] sm:$0xff]
        %v379 = vld [vmem:[%s311 + $0x1e8] sm:$0xff]
        %v380 = vld [vmem:[%s311 + $0x1f0] sm:$0xff]
        %v381 = vld [vmem:[%s311 + $0x1f8] sm:$0xff]
        %v382 = vld [vmem:[%s311 + $0x200] sm:$0xff]
        %v383 = vld [vmem:[%s311 + $0x208] sm:$0xff]
        %v384 = vld [vmem:[%s311 + $0x210] sm:$0xff]
        %v385 = vld [vmem:[%s311 + $0x218] sm:$0xff]
        %v386 = vld [vmem:[%s311 + $0x220] sm:$0xff]
        %v387 = vld [vmem:[%s311 + $0x228] sm:$0xff]
        %v388 = vld [vmem:[%s311 + $0x230] sm:$0xff]
        %v389 = vld [vmem:[%s311 + $0x238] sm:$0xff]
        %v390 = vld [vmem:[%s311 + $0x240] sm:$0xff]
        %v391 = vld [vmem:[%s311 + $0x248] sm:$0xff]
        %v392 = vld [vmem:[%s311 + $0x250] sm:$0xff]
        %v393 = vld [vmem:[%s311 + $0x258] sm:$0xff]
        %v394 = vld [vmem:[%s311 + $0x260] sm:$0xff]
        %v395 = vld [vmem:[%s311 + $0x268] sm:$0xff]
        %v396 = vld [vmem:[%s311 + $0x270] sm:$0xff]
        %v397 = vld [vmem:[%s311 + $0x278] sm:$0xff]
        %v398 = vld [vmem:[%s311 + $0x280] sm:$0xff]
        %v399 = vld [vmem:[%s311 + $0x288] sm:$0xff]
        %v400 = vld [vmem:[%s311 + $0x290] sm:$0xff]
        %v401 = vld [vmem:[%s311 + $0x298] sm:$0xff]
        %v402 = vld [vmem:[%s311 + $0x2a0] sm:$0xff]
        %v403 = vld [vmem:[%s311 + $0x2a8] sm:$0xff]
        %v404 = vld [vmem:[%s311 + $0x2b0] sm:$0xff]
        %v405 = vld [vmem:[%s311 + $0x2b8] sm:$0xff]
        %v406 = vld [vmem:[%s311 + $0x2c0] sm:$0xff]
        %v407 = vld [vmem:[%s311 + $0x2c8] sm:$0xff]
        %v408 = vld [vmem:[%s311 + $0x2d0] sm:$0xff]
        %v409 = vld [vmem:[%s311 + $0x2d8] sm:$0xff]
        %v410 = vld [vmem:[%s311 + $0x2e0] sm:$0xff]
        %v411 = vld [vmem:[%s311 + $0x2e8] sm:$0xff]
        %v412 = vld [vmem:[%s311 + $0x2f0] sm:$0xff]
        %v413 = vld [vmem:[%s311 + $0x2f8] sm:$0xff]
        %v414 = vld [vmem:[%s311 + $0x300] sm:$0xff]
        %v415 = vld [vmem:[%s311 + $0x308] sm:$0xff]
        %v416 = vld [vmem:[%s311 + $0x310] sm:$0xff]
        %v417 = vld [vmem:[%s311 + $0x318] sm:$0xff]
        %v418 = vld [vmem:[%s311 + $0x320] sm:$0xff]
        %v419 = vld [vmem:[%s311 + $0x328] sm:$0xff]
        %v420 = vld [vmem:[%s311 + $0x330] sm:$0xff]
        %v421 = vld [vmem:[%s311 + $0x338] sm:$0xff]
        %v422 = vld [vmem:[%s311 + $0x340] sm:$0xff]
        %v423 = vld [vmem:[%s311 + $0x348] sm:$0xff]
        %v424 = vld [vmem:[%s311 + $0x350] sm:$0xff]
        %v425 = vld [vmem:[%s311 + $0x358] sm:$0xff]
        %v426 = vld [vmem:[%s311 + $0x360] sm:$0xff]
        %v427 = vld [vmem:[%s311 + $0x368] sm:$0xff]
        %v428 = vld [vmem:[%s311 + $0x370] sm:$0xff]
        %v429 = vld [vmem:[%s311 + $0x378] sm:$0xff]
        %v430 = vld [vmem:[%s311 + $0x380] sm:$0xff]
        %v431 = vld [vmem:[%s311 + $0x388] sm:$0xff]
        %v432 = vld [vmem:[%s311 + $0x390] sm:$0xff]
        %v433 = vld [vmem:[%s311 + $0x398] sm:$0xff]
        %v434 = vld [vmem:[%s311 + $0x3a0] sm:$0xff]
        %v435 = vld [vmem:[%s311 + $0x3a8] sm:$0xff]
        %v436 = vld [vmem:[%s311 + $0x3b0] sm:$0xff]
        %v437 = vld [vmem:[%s311 + $0x3b8] sm:$0xff]
        %v438 = vld [vmem:[%s311 + $0x3c0] sm:$0xff]
        %v439 = vld [vmem:[%s311 + $0x3c8] sm:$0xff]
        %v440 = vld [vmem:[%s311 + $0x3d0] sm:$0xff]
        %v441 = vld [vmem:[%s311 + $0x3d8] sm:$0xff]
        %v442 = vld [vmem:[%s311 + $0x3e0] sm:$0xff]
        %v443 = vld [vmem:[%s311 + $0x3e8] sm:$0xff]
        %v444 = vld [vmem:[%s311 + $0x3f0] sm:$0xff]
        %v445 = vld [vmem:[%s311 + $0x3f8] sm:$0xff]
        %vm446 = vcmask 400384
        %v447 = vsel %vm446, %v318, 0.0
        %448 = vadd.xlane.f32.xlu0 %v447
        %v449 = vpop.xlane.xlu0 %448
        %v450 = vsel %vm446, %v319, 0.0
        %451 = vadd.xlane.f32.xlu0 %v450
        %v452 = vpop.xlane.xlu0 %451
        %v453 = vsel %vm446, %v320, 0.0
        %454 = vadd.xlane.f32.xlu0 %v453
        %v455 = vpop.xlane.xlu0 %454
        %v456 = vsel %vm446, %v321, 0.0
        %457 = vadd.xlane.f32.xlu0 %v456
        %v458 = vpop.xlane.xlu0 %457
        %v459 = vsel %vm446, %v322, 0.0
        %460 = vadd.xlane.f32.xlu0 %v459
        %v461 = vpop.xlane.xlu0 %460
        %v462 = vsel %vm446, %v323, 0.0
        %463 = vadd.xlane.f32.xlu0 %v462
        %v464 = vpop.xlane.xlu0 %463
        %v465 = vsel %vm446, %v324, 0.0
        %466 = vadd.xlane.f32.xlu0 %v465
        %v467 = vpop.xlane.xlu0 %466
        %v468 = vsel %vm446, %v325, 0.0
        %469 = vadd.xlane.f32.xlu0 %v468
        %v470 = vpop.xlane.xlu0 %469
        %v471 = vsel %vm446, %v326, 0.0
        %472 = vadd.xlane.f32.xlu0 %v471
        %v473 = vpop.xlane.xlu0 %472
        %v474 = vsel %vm446, %v327, 0.0
        %475 = vadd.xlane.f32.xlu0 %v474
        %v476 = vpop.xlane.xlu0 %475
        %v477 = vsel %vm446, %v328, 0.0
        %478 = vadd.xlane.f32.xlu0 %v477
        %v479 = vpop.xlane.xlu0 %478
        %v480 = vsel %vm446, %v329, 0.0
        %481 = vadd.xlane.f32.xlu0 %v480
        %v482 = vpop.xlane.xlu0 %481
        %v483 = vsel %vm446, %v330, 0.0
        %484 = vadd.xlane.f32.xlu0 %v483
        %v485 = vpop.xlane.xlu0 %484
        %v486 = vsel %vm446, %v331, 0.0
        %487 = vadd.xlane.f32.xlu0 %v486
        %v488 = vpop.xlane.xlu0 %487
        %v489 = vsel %vm446, %v332, 0.0
        %490 = vadd.xlane.f32.xlu0 %v489
        %v491 = vpop.xlane.xlu0 %490
        %v492 = vsel %vm446, %v333, 0.0
        %493 = vadd.xlane.f32.xlu0 %v492
        %v494 = vpop.xlane.xlu0 %493
        %v495 = vsel %vm446, %v334, 0.0
        %496 = vadd.xlane.f32.xlu0 %v495
        %v497 = vpop.xlane.xlu0 %496
        %v498 = vsel %vm446, %v335, 0.0
        %499 = vadd.xlane.f32.xlu0 %v498
        %v500 = vpop.xlane.xlu0 %499
        %v501 = vsel %vm446, %v336, 0.0
        %502 = vadd.xlane.f32.xlu0 %v501
        %v503 = vpop.xlane.xlu0 %502
        %v504 = vsel %vm446, %v337, 0.0
        %505 = vadd.xlane.f32.xlu0 %v504
        %v506 = vpop.xlane.xlu0 %505
        %v507 = vsel %vm446, %v338, 0.0
        %508 = vadd.xlane.f32.xlu0 %v507
        %v509 = vpop.xlane.xlu0 %508
        %v510 = vsel %vm446, %v339, 0.0
        %511 = vadd.xlane.f32.xlu0 %v510
        %v512 = vpop.xlane.xlu0 %511
        %v513 = vsel %vm446, %v340, 0.0
        %514 = vadd.xlane.f32.xlu0 %v513
        %v515 = vpop.xlane.xlu0 %514
        %v516 = vsel %vm446, %v341, 0.0
        %517 = vadd.xlane.f32.xlu0 %v516
        %v518 = vpop.xlane.xlu0 %517
        %v519 = vsel %vm446, %v342, 0.0
        %520 = vadd.xlane.f32.xlu0 %v519
        %v521 = vpop.xlane.xlu0 %520
        %v522 = vsel %vm446, %v343, 0.0
        %523 = vadd.xlane.f32.xlu0 %v522
        %v524 = vpop.xlane.xlu0 %523
        %v525 = vsel %vm446, %v344, 0.0
        %526 = vadd.xlane.f32.xlu0 %v525
        %v527 = vpop.xlane.xlu0 %526
        %v528 = vsel %vm446, %v345, 0.0
        %529 = vadd.xlane.f32.xlu0 %v528
        %v530 = vpop.xlane.xlu0 %529
        %v531 = vsel %vm446, %v346, 0.0
        %532 = vadd.xlane.f32.xlu0 %v531
        %v533 = vpop.xlane.xlu0 %532
        %v534 = vsel %vm446, %v347, 0.0
        %535 = vadd.xlane.f32.xlu0 %v534
        %v536 = vpop.xlane.xlu0 %535
        %v537 = vsel %vm446, %v348, 0.0
        %538 = vadd.xlane.f32.xlu0 %v537
        %v539 = vpop.xlane.xlu0 %538
        %v540 = vsel %vm446, %v349, 0.0
        %541 = vadd.xlane.f32.xlu0 %v540
        %v542 = vpop.xlane.xlu0 %541
        %v543 = vsel %vm446, %v350, 0.0
        %544 = vadd.xlane.f32.xlu0 %v543
        %v545 = vpop.xlane.xlu0 %544
        %v546 = vsel %vm446, %v351, 0.0
        %547 = vadd.xlane.f32.xlu0 %v546
        %v548 = vpop.xlane.xlu0 %547
        %v549 = vsel %vm446, %v352, 0.0
        %550 = vadd.xlane.f32.xlu0 %v549
        %v551 = vpop.xlane.xlu0 %550
        %v552 = vsel %vm446, %v353, 0.0
        %553 = vadd.xlane.f32.xlu0 %v552
        %v554 = vpop.xlane.xlu0 %553
        %v555 = vsel %vm446, %v354, 0.0
        %556 = vadd.xlane.f32.xlu0 %v555
        %v557 = vpop.xlane.xlu0 %556
        %v558 = vsel %vm446, %v355, 0.0
        %559 = vadd.xlane.f32.xlu0 %v558
        %v560 = vpop.xlane.xlu0 %559
        %v561 = vsel %vm446, %v356, 0.0
        %562 = vadd.xlane.f32.xlu0 %v561
        %v563 = vpop.xlane.xlu0 %562
        %v564 = vsel %vm446, %v357, 0.0
        %565 = vadd.xlane.f32.xlu0 %v564
        %v566 = vpop.xlane.xlu0 %565
        %v567 = vsel %vm446, %v358, 0.0
        %568 = vadd.xlane.f32.xlu0 %v567
        %v569 = vpop.xlane.xlu0 %568
        %v570 = vsel %vm446, %v359, 0.0
        %571 = vadd.xlane.f32.xlu0 %v570
        %v572 = vpop.xlane.xlu0 %571
        %v573 = vsel %vm446, %v360, 0.0
        %574 = vadd.xlane.f32.xlu0 %v573
        %v575 = vpop.xlane.xlu0 %574
        %v576 = vsel %vm446, %v361, 0.0
        %577 = vadd.xlane.f32.xlu0 %v576
        %v578 = vpop.xlane.xlu0 %577
        %v579 = vsel %vm446, %v362, 0.0
        %580 = vadd.xlane.f32.xlu0 %v579
        %v581 = vpop.xlane.xlu0 %580
        %v582 = vsel %vm446, %v363, 0.0
        %583 = vadd.xlane.f32.xlu0 %v582
        %v584 = vpop.xlane.xlu0 %583
        %v585 = vsel %vm446, %v364, 0.0
        %586 = vadd.xlane.f32.xlu0 %v585
        %v587 = vpop.xlane.xlu0 %586
        %v588 = vsel %vm446, %v365, 0.0
        %589 = vadd.xlane.f32.xlu0 %v588
        %v590 = vpop.xlane.xlu0 %589
        %v591 = vsel %vm446, %v366, 0.0
        %592 = vadd.xlane.f32.xlu0 %v591
        %v593 = vpop.xlane.xlu0 %592
        %v594 = vsel %vm446, %v367, 0.0
        %595 = vadd.xlane.f32.xlu0 %v594
        %v596 = vpop.xlane.xlu0 %595
        %v597 = vsel %vm446, %v368, 0.0
        %598 = vadd.xlane.f32.xlu0 %v597
        %v599 = vpop.xlane.xlu0 %598
        %v600 = vsel %vm446, %v369, 0.0
        %601 = vadd.xlane.f32.xlu0 %v600
        %v602 = vpop.xlane.xlu0 %601
        %v603 = vsel %vm446, %v370, 0.0
        %604 = vadd.xlane.f32.xlu0 %v603
        %v605 = vpop.xlane.xlu0 %604
        %v606 = vsel %vm446, %v371, 0.0
        %607 = vadd.xlane.f32.xlu0 %v606
        %v608 = vpop.xlane.xlu0 %607
        %v609 = vsel %vm446, %v372, 0.0
        %610 = vadd.xlane.f32.xlu0 %v609
        %v611 = vpop.xlane.xlu0 %610
        %v612 = vsel %vm446, %v373, 0.0
        %613 = vadd.xlane.f32.xlu0 %v612
        %v614 = vpop.xlane.xlu0 %613
        %v615 = vsel %vm446, %v374, 0.0
        %616 = vadd.xlane.f32.xlu0 %v615
        %v617 = vpop.xlane.xlu0 %616
        %v618 = vsel %vm446, %v375, 0.0
        %619 = vadd.xlane.f32.xlu0 %v618
        %v620 = vpop.xlane.xlu0 %619
        %v621 = vsel %vm446, %v376, 0.0
        %622 = vadd.xlane.f32.xlu0 %v621
        %v623 = vpop.xlane.xlu0 %622
        %v624 = vsel %vm446, %v377, 0.0
        %625 = vadd.xlane.f32.xlu0 %v624
        %v626 = vpop.xlane.xlu0 %625
        %v627 = vsel %vm446, %v378, 0.0
        %628 = vadd.xlane.f32.xlu0 %v627
        %v629 = vpop.xlane.xlu0 %628
        %v630 = vsel %vm446, %v379, 0.0
        %631 = vadd.xlane.f32.xlu0 %v630
        %v632 = vpop.xlane.xlu0 %631
        %v633 = vsel %vm446, %v380, 0.0
        %634 = vadd.xlane.f32.xlu0 %v633
        %v635 = vpop.xlane.xlu0 %634
        %v636 = vsel %vm446, %v381, 0.0
        %637 = vadd.xlane.f32.xlu0 %v636
        %v638 = vpop.xlane.xlu0 %637
        %v639 = vsel %vm446, %v382, 0.0
        %640 = vadd.xlane.f32.xlu0 %v639
        %v641 = vpop.xlane.xlu0 %640
        %v642 = vsel %vm446, %v383, 0.0
        %643 = vadd.xlane.f32.xlu0 %v642
        %v644 = vpop.xlane.xlu0 %643
        %v645 = vsel %vm446, %v384, 0.0
        %646 = vadd.xlane.f32.xlu0 %v645
        %v647 = vpop.xlane.xlu0 %646
        %v648 = vsel %vm446, %v385, 0.0
        %649 = vadd.xlane.f32.xlu0 %v648
        %v650 = vpop.xlane.xlu0 %649
        %v651 = vsel %vm446, %v386, 0.0
        %652 = vadd.xlane.f32.xlu0 %v651
        %v653 = vpop.xlane.xlu0 %652
        %v654 = vsel %vm446, %v387, 0.0
        %655 = vadd.xlane.f32.xlu0 %v654
        %v656 = vpop.xlane.xlu0 %655
        %v657 = vsel %vm446, %v388, 0.0
        %658 = vadd.xlane.f32.xlu0 %v657
        %v659 = vpop.xlane.xlu0 %658
        %v660 = vsel %vm446, %v389, 0.0
        %661 = vadd.xlane.f32.xlu0 %v660
        %v662 = vpop.xlane.xlu0 %661
        %v663 = vsel %vm446, %v390, 0.0
        %664 = vadd.xlane.f32.xlu0 %v663
        %v665 = vpop.xlane.xlu0 %664
        %v666 = vsel %vm446, %v391, 0.0
        %667 = vadd.xlane.f32.xlu0 %v666
        %v668 = vpop.xlane.xlu0 %667
        %v669 = vsel %vm446, %v392, 0.0
        %670 = vadd.xlane.f32.xlu0 %v669
        %v671 = vpop.xlane.xlu0 %670
        %v672 = vsel %vm446, %v393, 0.0
        %673 = vadd.xlane.f32.xlu0 %v672
        %v674 = vpop.xlane.xlu0 %673
        %v675 = vsel %vm446, %v394, 0.0
        %676 = vadd.xlane.f32.xlu0 %v675
        %v677 = vpop.xlane.xlu0 %676
        %v678 = vsel %vm446, %v395, 0.0
        %679 = vadd.xlane.f32.xlu0 %v678
        %v680 = vpop.xlane.xlu0 %679
        %v681 = vsel %vm446, %v396, 0.0
        %682 = vadd.xlane.f32.xlu0 %v681
        %v683 = vpop.xlane.xlu0 %682
        %v684 = vsel %vm446, %v397, 0.0
        %685 = vadd.xlane.f32.xlu0 %v684
        %v686 = vpop.xlane.xlu0 %685
        %v687 = vsel %vm446, %v398, 0.0
        %688 = vadd.xlane.f32.xlu0 %v687
        %v689 = vpop.xlane.xlu0 %688
        %v690 = vsel %vm446, %v399, 0.0
        %691 = vadd.xlane.f32.xlu0 %v690
        %v692 = vpop.xlane.xlu0 %691
        %v693 = vsel %vm446, %v400, 0.0
        %694 = vadd.xlane.f32.xlu0 %v693
        %v695 = vpop.xlane.xlu0 %694
        %v696 = vsel %vm446, %v401, 0.0
        %697 = vadd.xlane.f32.xlu0 %v696
        %v698 = vpop.xlane.xlu0 %697
        %v699 = vsel %vm446, %v402, 0.0
        %700 = vadd.xlane.f32.xlu0 %v699
        %v701 = vpop.xlane.xlu0 %700
        %v702 = vsel %vm446, %v403, 0.0
        %703 = vadd.xlane.f32.xlu0 %v702
        %v704 = vpop.xlane.xlu0 %703
        %v705 = vsel %vm446, %v404, 0.0
        %706 = vadd.xlane.f32.xlu0 %v705
        %v707 = vpop.xlane.xlu0 %706
        %v708 = vsel %vm446, %v405, 0.0
        %709 = vadd.xlane.f32.xlu0 %v708
        %v710 = vpop.xlane.xlu0 %709
        %v711 = vsel %vm446, %v406, 0.0
        %712 = vadd.xlane.f32.xlu0 %v711
        %v713 = vpop.xlane.xlu0 %712
        %v714 = vsel %vm446, %v407, 0.0
        %715 = vadd.xlane.f32.xlu0 %v714
        %v716 = vpop.xlane.xlu0 %715
        %v717 = vsel %vm446, %v408, 0.0
        %718 = vadd.xlane.f32.xlu0 %v717
        %v719 = vpop.xlane.xlu0 %718
        %v720 = vsel %vm446, %v409, 0.0
        %721 = vadd.xlane.f32.xlu0 %v720
        %v722 = vpop.xlane.xlu0 %721
        %v723 = vsel %vm446, %v410, 0.0
        %724 = vadd.xlane.f32.xlu0 %v723
        %v725 = vpop.xlane.xlu0 %724
        %v726 = vsel %vm446, %v411, 0.0
        %727 = vadd.xlane.f32.xlu0 %v726
        %v728 = vpop.xlane.xlu0 %727
        %v729 = vsel %vm446, %v412, 0.0
        %730 = vadd.xlane.f32.xlu0 %v729
        %v731 = vpop.xlane.xlu0 %730
        %v732 = vsel %vm446, %v413, 0.0
        %733 = vadd.xlane.f32.xlu0 %v732
        %v734 = vpop.xlane.xlu0 %733
        %v735 = vsel %vm446, %v414, 0.0
        %736 = vadd.xlane.f32.xlu0 %v735
        %v737 = vpop.xlane.xlu0 %736
        %v738 = vsel %vm446, %v415, 0.0
        %739 = vadd.xlane.f32.xlu0 %v738
        %v740 = vpop.xlane.xlu0 %739
        %v741 = vsel %vm446, %v416, 0.0
        %742 = vadd.xlane.f32.xlu0 %v741
        %v743 = vpop.xlane.xlu0 %742
        %v744 = vsel %vm446, %v417, 0.0
        %745 = vadd.xlane.f32.xlu0 %v744
        %v746 = vpop.xlane.xlu0 %745
        %v747 = vsel %vm446, %v418, 0.0
        %748 = vadd.xlane.f32.xlu0 %v747
        %v749 = vpop.xlane.xlu0 %748
        %v750 = vsel %vm446, %v419, 0.0
        %751 = vadd.xlane.f32.xlu0 %v750
        %v752 = vpop.xlane.xlu0 %751
        %v753 = vsel %vm446, %v420, 0.0
        %754 = vadd.xlane.f32.xlu0 %v753
        %v755 = vpop.xlane.xlu0 %754
        %v756 = vsel %vm446, %v421, 0.0
        %757 = vadd.xlane.f32.xlu0 %v756
        %v758 = vpop.xlane.xlu0 %757
        %v759 = vsel %vm446, %v422, 0.0
        %760 = vadd.xlane.f32.xlu0 %v759
        %v761 = vpop.xlane.xlu0 %760
        %v762 = vsel %vm446, %v423, 0.0
        %763 = vadd.xlane.f32.xlu0 %v762
        %v764 = vpop.xlane.xlu0 %763
        %v765 = vsel %vm446, %v424, 0.0
        %766 = vadd.xlane.f32.xlu0 %v765
        %v767 = vpop.xlane.xlu0 %766
        %v768 = vsel %vm446, %v425, 0.0
        %769 = vadd.xlane.f32.xlu0 %v768
        %v770 = vpop.xlane.xlu0 %769
        %v771 = vsel %vm446, %v426, 0.0
        %772 = vadd.xlane.f32.xlu0 %v771
        %v773 = vpop.xlane.xlu0 %772
        %v774 = vsel %vm446, %v427, 0.0
        %775 = vadd.xlane.f32.xlu0 %v774
        %v776 = vpop.xlane.xlu0 %775
        %v777 = vsel %vm446, %v428, 0.0
        %778 = vadd.xlane.f32.xlu0 %v777
        %v779 = vpop.xlane.xlu0 %778
        %v780 = vsel %vm446, %v429, 0.0
        %781 = vadd.xlane.f32.xlu0 %v780
        %v782 = vpop.xlane.xlu0 %781
        %v783 = vsel %vm446, %v430, 0.0
        %784 = vadd.xlane.f32.xlu0 %v783
        %v785 = vpop.xlane.xlu0 %784
        %v786 = vsel %vm446, %v431, 0.0
        %787 = vadd.xlane.f32.xlu0 %v786
        %v788 = vpop.xlane.xlu0 %787
        %v789 = vsel %vm446, %v432, 0.0
        %790 = vadd.xlane.f32.xlu0 %v789
        %v791 = vpop.xlane.xlu0 %790
        %v792 = vsel %vm446, %v433, 0.0
        %793 = vadd.xlane.f32.xlu0 %v792
        %v794 = vpop.xlane.xlu0 %793
        %v795 = vsel %vm446, %v434, 0.0
        %796 = vadd.xlane.f32.xlu0 %v795
        %v797 = vpop.xlane.xlu0 %796
        %v798 = vsel %vm446, %v435, 0.0
        %799 = vadd.xlane.f32.xlu0 %v798
        %v800 = vpop.xlane.xlu0 %799
        %v801 = vsel %vm446, %v436, 0.0
        %802 = vadd.xlane.f32.xlu0 %v801
        %v803 = vpop.xlane.xlu0 %802
        %v804 = vsel %vm446, %v437, 0.0
        %805 = vadd.xlane.f32.xlu0 %v804
        %v806 = vpop.xlane.xlu0 %805
        %v807 = vsel %vm446, %v438, 0.0
        %808 = vadd.xlane.f32.xlu0 %v807
        %v809 = vpop.xlane.xlu0 %808
        %v810 = vsel %vm446, %v439, 0.0
        %811 = vadd.xlane.f32.xlu0 %v810
        %v812 = vpop.xlane.xlu0 %811
        %v813 = vsel %vm446, %v440, 0.0
        %814 = vadd.xlane.f32.xlu0 %v813
        %v815 = vpop.xlane.xlu0 %814
        %v816 = vsel %vm446, %v441, 0.0
        %817 = vadd.xlane.f32.xlu0 %v816
        %v818 = vpop.xlane.xlu0 %817
        %v819 = vsel %vm446, %v442, 0.0
        %820 = vadd.xlane.f32.xlu0 %v819
        %v821 = vpop.xlane.xlu0 %820
        %v822 = vsel %vm446, %v443, 0.0
        %823 = vadd.xlane.f32.xlu0 %v822
        %v824 = vpop.xlane.xlu0 %823
        %v825 = vsel %vm446, %v444, 0.0
        %826 = vadd.xlane.f32.xlu0 %v825
        %v827 = vpop.xlane.xlu0 %826
        %v828 = vsel %vm446, %v445, 0.0
        %829 = vadd.xlane.f32.xlu0 %v828
        %v830 = vpop.xlane.xlu0 %829
        %v831 = vld [vmem:[%s1] sm:$0xff]
        %v832 = vld [vmem:[%s1 + $0x8] sm:$0xff]
        %v833 = vld [vmem:[%s1 + $0x10] sm:$0xff]
        %v834 = vld [vmem:[%s1 + $0x18] sm:$0xff]
        %v835 = vld [vmem:[%s1 + $0x20] sm:$0xff]
        %v836 = vld [vmem:[%s1 + $0x28] sm:$0xff]
        %v837 = vld [vmem:[%s1 + $0x30] sm:$0xff]
        %v838 = vld [vmem:[%s1 + $0x38] sm:$0xff]
        %v839 = vld [vmem:[%s1 + $0x40] sm:$0xff]
        %v840 = vld [vmem:[%s1 + $0x48] sm:$0xff]
        %v841 = vld [vmem:[%s1 + $0x50] sm:$0xff]
        %v842 = vld [vmem:[%s1 + $0x58] sm:$0xff]
        %v843 = vld [vmem:[%s1 + $0x60] sm:$0xff]
        %v844 = vld [vmem:[%s1 + $0x68] sm:$0xff]
        %v845 = vld [vmem:[%s1 + $0x70] sm:$0xff]
        %v846 = vld [vmem:[%s1 + $0x78] sm:$0xff]
        %v847 = vld [vmem:[%s2] sm:$0x1]
        %v849 = vperm.slane %v847, 0
        %v979 = vlaneseq
        %v980 = vand.u32 %v979, 127
        %v981 = vperm.slane %v449, %v980
        %v982 = vadd.s32 %v980, 4294967288
        %v983 = vperm.slane %v452, %v982
        %vm984 = vcmask 130112
        %v985 = vsel %vm984, %v983, %v981
        %v986 = vadd.s32 %v980, 4294967280
        %v987 = vperm.slane %v455, %v986
        %vm988 = vcmask 195712
        %v989 = vsel %vm988, %v987, %v985
        %v990 = vadd.s32 %v980, 4294967272
        %v991 = vperm.slane %v458, %v990
        %vm992 = vcmask 261312
        %v993 = vsel %vm992, %v991, %v989
        %v994 = vadd.s32 %v980, 4294967264
        %v995 = vperm.slane %v461, %v994
        %vm996 = vcmask 326912
        %v997 = vsel %vm996, %v995, %v993
        %v998 = vadd.s32 %v980, 4294967256
        %v999 = vperm.slane %v464, %v998
        %vm1000 = vcmask 392512
        %v1001 = vsel %vm1000, %v999, %v997
        %v1002 = vadd.s32 %v980, 4294967248
        %v1003 = vperm.slane %v467, %v1002
        %vm1004 = vcmask 458112
        %v1005 = vsel %vm1004, %v1003, %v1001
        %v1006 = vadd.s32 %v980, 4294967240
        %v1007 = vperm.slane %v470, %v1006
        %vm1008 = vcmask 523712
        %v1009 = vsel %vm1008, %v1007, %v1005
        %v1010 = vadd.s32 %v980, 4294967232
        %v1011 = vperm.slane %v473, %v1010
        %vm1012 = vcmask 589312
        %v1013 = vsel %vm1012, %v1011, %v1009
        %v1014 = vadd.s32 %v980, 4294967224
        %v1015 = vperm.slane %v476, %v1014
        %vm1016 = vcmask 654912
        %v1017 = vsel %vm1016, %v1015, %v1013
        %v1018 = vadd.s32 %v980, 4294967216
        %v1019 = vperm.slane %v479, %v1018
        %vm1020 = vcmask 720512
        %v1021 = vsel %vm1020, %v1019, %v1017
        %v1022 = vadd.s32 %v980, 4294967208
        %v1023 = vperm.slane %v482, %v1022
        %vm1024 = vcmask 786112
        %v1025 = vsel %vm1024, %v1023, %v1021
        %v1026 = vadd.s32 %v980, 4294967200
        %v1027 = vperm.slane %v485, %v1026
        %vm1028 = vcmask 851712
        %v1029 = vsel %vm1028, %v1027, %v1025
        %v1030 = vadd.s32 %v980, 4294967192
        %v1031 = vperm.slane %v488, %v1030
        %vm1032 = vcmask 917312
        %v1033 = vsel %vm1032, %v1031, %v1029
        %v1034 = vadd.s32 %v980, 4294967184
        %v1035 = vperm.slane %v491, %v1034
        %vm1036 = vcmask 982912
        %v1037 = vsel %vm1036, %v1035, %v1033
        %v1038 = vadd.s32 %v980, 4294967176
        %v1039 = vperm.slane %v494, %v1038
        %vm1040 = vcmask 1048512
        %v1041 = vsel %vm1040, %v1039, %v1037
        %v1042 = vperm.slane %v497, %v980
        %v1043 = vperm.slane %v500, %v982
        %v1044 = vsel %vm984, %v1043, %v1042
        %v1045 = vperm.slane %v503, %v986
        %v1046 = vsel %vm988, %v1045, %v1044
        %v1047 = vperm.slane %v506, %v990
        %v1048 = vsel %vm992, %v1047, %v1046
        %v1049 = vperm.slane %v509, %v994
        %v1050 = vsel %vm996, %v1049, %v1048
        %v1051 = vperm.slane %v512, %v998
        %v1052 = vsel %vm1000, %v1051, %v1050
        %v1053 = vperm.slane %v515, %v1002
        %v1054 = vsel %vm1004, %v1053, %v1052
        %v1055 = vperm.slane %v518, %v1006
        %v1056 = vsel %vm1008, %v1055, %v1054
        %v1057 = vperm.slane %v521, %v1010
        %v1058 = vsel %vm1012, %v1057, %v1056
        %v1059 = vperm.slane %v524, %v1014
        %v1060 = vsel %vm1016, %v1059, %v1058
        %v1061 = vperm.slane %v527, %v1018
        %v1062 = vsel %vm1020, %v1061, %v1060
        %v1063 = vperm.slane %v530, %v1022
        %v1064 = vsel %vm1024, %v1063, %v1062
        %v1065 = vperm.slane %v533, %v1026
        %v1066 = vsel %vm1028, %v1065, %v1064
        %v1067 = vperm.slane %v536, %v1030
        %v1068 = vsel %vm1032, %v1067, %v1066
        %v1069 = vperm.slane %v539, %v1034
        %v1070 = vsel %vm1036, %v1069, %v1068
        %v1071 = vperm.slane %v542, %v1038
        %v1072 = vsel %vm1040, %v1071, %v1070
        %v1073 = vperm.slane %v545, %v980
        %v1074 = vperm.slane %v548, %v982
        %v1075 = vsel %vm984, %v1074, %v1073
        %v1076 = vperm.slane %v551, %v986
        %v1077 = vsel %vm988, %v1076, %v1075
        %v1078 = vperm.slane %v554, %v990
        %v1079 = vsel %vm992, %v1078, %v1077
        %v1080 = vperm.slane %v557, %v994
        %v1081 = vsel %vm996, %v1080, %v1079
        %v1082 = vperm.slane %v560, %v998
        %v1083 = vsel %vm1000, %v1082, %v1081
        %v1084 = vperm.slane %v563, %v1002
        %v1085 = vsel %vm1004, %v1084, %v1083
        %v1086 = vperm.slane %v566, %v1006
        %v1087 = vsel %vm1008, %v1086, %v1085
        %v1088 = vperm.slane %v569, %v1010
        %v1089 = vsel %vm1012, %v1088, %v1087
        %v1090 = vperm.slane %v572, %v1014
        %v1091 = vsel %vm1016, %v1090, %v1089
        %v1092 = vperm.slane %v575, %v1018
        %v1093 = vsel %vm1020, %v1092, %v1091
        %v1094 = vperm.slane %v578, %v1022
        %v1095 = vsel %vm1024, %v1094, %v1093
        %v1096 = vperm.slane %v581, %v1026
        %v1097 = vsel %vm1028, %v1096, %v1095
        %v1098 = vperm.slane %v584, %v1030
        %v1099 = vsel %vm1032, %v1098, %v1097
        %v1100 = vperm.slane %v587, %v1034
        %v1101 = vsel %vm1036, %v1100, %v1099
        %v1102 = vperm.slane %v590, %v1038
        %v1103 = vsel %vm1040, %v1102, %v1101
        %v1104 = vperm.slane %v593, %v980
        %v1105 = vperm.slane %v596, %v982
        %v1106 = vsel %vm984, %v1105, %v1104
        %v1107 = vperm.slane %v599, %v986
        %v1108 = vsel %vm988, %v1107, %v1106
        %v1109 = vperm.slane %v602, %v990
        %v1110 = vsel %vm992, %v1109, %v1108
        %v1111 = vperm.slane %v605, %v994
        %v1112 = vsel %vm996, %v1111, %v1110
        %v1113 = vperm.slane %v608, %v998
        %v1114 = vsel %vm1000, %v1113, %v1112
        %v1115 = vperm.slane %v611, %v1002
        %v1116 = vsel %vm1004, %v1115, %v1114
        %v1117 = vperm.slane %v614, %v1006
        %v1118 = vsel %vm1008, %v1117, %v1116
        %v1119 = vperm.slane %v617, %v1010
        %v1120 = vsel %vm1012, %v1119, %v1118
        %v1121 = vperm.slane %v620, %v1014
        %v1122 = vsel %vm1016, %v1121, %v1120
        %v1123 = vperm.slane %v623, %v1018
        %v1124 = vsel %vm1020, %v1123, %v1122
        %v1125 = vperm.slane %v626, %v1022
        %v1126 = vsel %vm1024, %v1125, %v1124
        %v1127 = vperm.slane %v629, %v1026
        %v1128 = vsel %vm1028, %v1127, %v1126
        %v1129 = vperm.slane %v632, %v1030
        %v1130 = vsel %vm1032, %v1129, %v1128
        %v1131 = vperm.slane %v635, %v1034
        %v1132 = vsel %vm1036, %v1131, %v1130
        %v1133 = vperm.slane %v638, %v1038
        %v1134 = vsel %vm1040, %v1133, %v1132
        %v1135 = vperm.slane %v641, %v980
        %v1136 = vperm.slane %v644, %v982
        %v1137 = vsel %vm984, %v1136, %v1135
        %v1138 = vperm.slane %v647, %v986
        %v1139 = vsel %vm988, %v1138, %v1137
        %v1140 = vperm.slane %v650, %v990
        %v1141 = vsel %vm992, %v1140, %v1139
        %v1142 = vperm.slane %v653, %v994
        %v1143 = vsel %vm996, %v1142, %v1141
        %v1144 = vperm.slane %v656, %v998
        %v1145 = vsel %vm1000, %v1144, %v1143
        %v1146 = vperm.slane %v659, %v1002
        %v1147 = vsel %vm1004, %v1146, %v1145
        %v1148 = vperm.slane %v662, %v1006
        %v1149 = vsel %vm1008, %v1148, %v1147
        %v1150 = vperm.slane %v665, %v1010
        %v1151 = vsel %vm1012, %v1150, %v1149
        %v1152 = vperm.slane %v668, %v1014
        %v1153 = vsel %vm1016, %v1152, %v1151
        %v1154 = vperm.slane %v671, %v1018
        %v1155 = vsel %vm1020, %v1154, %v1153
        %v1156 = vperm.slane %v674, %v1022
        %v1157 = vsel %vm1024, %v1156, %v1155
        %v1158 = vperm.slane %v677, %v1026
        %v1159 = vsel %vm1028, %v1158, %v1157
        %v1160 = vperm.slane %v680, %v1030
        %v1161 = vsel %vm1032, %v1160, %v1159
        %v1162 = vperm.slane %v683, %v1034
        %v1163 = vsel %vm1036, %v1162, %v1161
        %v1164 = vperm.slane %v686, %v1038
        %v1165 = vsel %vm1040, %v1164, %v1163
        %v1166 = vperm.slane %v689, %v980
        %v1167 = vperm.slane %v692, %v982
        %v1168 = vsel %vm984, %v1167, %v1166
        %v1169 = vperm.slane %v695, %v986
        %v1170 = vsel %vm988, %v1169, %v1168
        %v1171 = vperm.slane %v698, %v990
        %v1172 = vsel %vm992, %v1171, %v1170
        %v1173 = vperm.slane %v701, %v994
        %v1174 = vsel %vm996, %v1173, %v1172
        %v1175 = vperm.slane %v704, %v998
        %v1176 = vsel %vm1000, %v1175, %v1174
        %v1177 = vperm.slane %v707, %v1002
        %v1178 = vsel %vm1004, %v1177, %v1176
        %v1179 = vperm.slane %v710, %v1006
        %v1180 = vsel %vm1008, %v1179, %v1178
        %v1181 = vperm.slane %v713, %v1010
        %v1182 = vsel %vm1012, %v1181, %v1180
        %v1183 = vperm.slane %v716, %v1014
        %v1184 = vsel %vm1016, %v1183, %v1182
        %v1185 = vperm.slane %v719, %v1018
        %v1186 = vsel %vm1020, %v1185, %v1184
        %v1187 = vperm.slane %v722, %v1022
        %v1188 = vsel %vm1024, %v1187, %v1186
        %v1189 = vperm.slane %v725, %v1026
        %v1190 = vsel %vm1028, %v1189, %v1188
        %v1191 = vperm.slane %v728, %v1030
        %v1192 = vsel %vm1032, %v1191, %v1190
        %v1193 = vperm.slane %v731, %v1034
        %v1194 = vsel %vm1036, %v1193, %v1192
        %v1195 = vperm.slane %v734, %v1038
        %v1196 = vsel %vm1040, %v1195, %v1194
        %v1197 = vperm.slane %v737, %v980
        %v1198 = vperm.slane %v740, %v982
        %v1199 = vsel %vm984, %v1198, %v1197
        %v1200 = vperm.slane %v743, %v986
        %v1201 = vsel %vm988, %v1200, %v1199
        %v1202 = vperm.slane %v746, %v990
        %v1203 = vsel %vm992, %v1202, %v1201
        %v1204 = vperm.slane %v749, %v994
        %v1205 = vsel %vm996, %v1204, %v1203
        %v1206 = vperm.slane %v752, %v998
        %v1207 = vsel %vm1000, %v1206, %v1205
        %v1208 = vperm.slane %v755, %v1002
        %v1209 = vsel %vm1004, %v1208, %v1207
        %v1210 = vperm.slane %v758, %v1006
        %v1211 = vsel %vm1008, %v1210, %v1209
        %v1212 = vperm.slane %v761, %v1010
        %v1213 = vsel %vm1012, %v1212, %v1211
        %v1214 = vperm.slane %v764, %v1014
        %v1215 = vsel %vm1016, %v1214, %v1213
        %v1216 = vperm.slane %v767, %v1018
        %v1217 = vsel %vm1020, %v1216, %v1215
        %v1218 = vperm.slane %v770, %v1022
        %v1219 = vsel %vm1024, %v1218, %v1217
        %v1220 = vperm.slane %v773, %v1026
        %v1221 = vsel %vm1028, %v1220, %v1219
        %v1222 = vperm.slane %v776, %v1030
        %v1223 = vsel %vm1032, %v1222, %v1221
        %v1224 = vperm.slane %v779, %v1034
        %v1225 = vsel %vm1036, %v1224, %v1223
        %v1226 = vperm.slane %v782, %v1038
        %v1227 = vsel %vm1040, %v1226, %v1225
        %v1228 = vperm.slane %v785, %v980
        %v1229 = vperm.slane %v788, %v982
        %v1230 = vsel %vm984, %v1229, %v1228
        %v1231 = vperm.slane %v791, %v986
        %v1232 = vsel %vm988, %v1231, %v1230
        %v1233 = vperm.slane %v794, %v990
        %v1234 = vsel %vm992, %v1233, %v1232
        %v1235 = vperm.slane %v797, %v994
        %v1236 = vsel %vm996, %v1235, %v1234
        %v1237 = vperm.slane %v800, %v998
        %v1238 = vsel %vm1000, %v1237, %v1236
        %v1239 = vperm.slane %v803, %v1002
        %v1240 = vsel %vm1004, %v1239, %v1238
        %v1241 = vperm.slane %v806, %v1006
        %v1242 = vsel %vm1008, %v1241, %v1240
        %v1243 = vperm.slane %v809, %v1010
        %v1244 = vsel %vm1012, %v1243, %v1242
        %v1245 = vperm.slane %v812, %v1014
        %v1246 = vsel %vm1016, %v1245, %v1244
        %v1247 = vperm.slane %v815, %v1018
        %v1248 = vsel %vm1020, %v1247, %v1246
        %v1249 = vperm.slane %v818, %v1022
        %v1250 = vsel %vm1024, %v1249, %v1248
        %v1251 = vperm.slane %v821, %v1026
        %v1252 = vsel %vm1028, %v1251, %v1250
        %v1253 = vperm.slane %v824, %v1030
        %v1254 = vsel %vm1032, %v1253, %v1252
        %v1255 = vperm.slane %v827, %v1034
        %v1256 = vsel %vm1036, %v1255, %v1254
        %v1257 = vperm.slane %v830, %v1038
        %v1258 = vsel %vm1040, %v1257, %v1256
        %vm1259 = vcmask 1041409
        %v1260 = vsel %vm1259, %v1072, %v1041
        %vm1261 = vcmask 1042434
        %v1262 = vsel %vm1261, %v1103, %v1260
        %vm1263 = vcmask 1043459
        %v1264 = vsel %vm1263, %v1134, %v1262
        %vm1265 = vcmask 1044484
        %v1266 = vsel %vm1265, %v1165, %v1264
        %vm1267 = vcmask 1045509
        %v1268 = vsel %vm1267, %v1196, %v1266
        %vm1269 = vcmask 1046534
        %v1270 = vsel %vm1269, %v1227, %v1268
        %vm1271 = vcmask 1047559
        %v1272 = vsel %vm1271, %v1258, %v1270
        %1274 = vmatpush.msra.mxu0 %v846
        %1275 = vmatpush.msra.mxu0 %v845
        %1276 = vmatpush.msra.mxu0 %v844
        %1277 = vmatpush.msra.mxu0 %v843
        %1278 = vmatpush.msra.mxu0 %v842
        %1279 = vmatpush.msra.mxu0 %v841
        %1280 = vmatpush.msra.mxu0 %v840
        %1281 = vmatpush.msra.mxu0 %v839
        %1282 = vmatpush.msra.mxu0 %v838
        %1283 = vmatpush.msra.mxu0 %v837
        %1284 = vmatpush.msra.mxu0 %v836
        %1285 = vmatpush.msra.mxu0 %v835
        %1286 = vmatpush.msra.mxu0 %v834
        %1287 = vmatpush.msra.mxu0 %v833
        %1288 = vmatpush.msra.mxu0 %v832
        %1289 = vmatpush.msra.mxu0 %v831
        %1290 = vmatmul.f32.gmra.mxu0 %v1272
        %v1291 = vpop.f32.mrf.mxu0
        %v1292 = vadd.f32 %v849, %v1291
        %1293 = vdwg.mxu0
        %1294 = vst [vmem:[%s300] sm:$0xff] %v1292
        %v1295 = vld [vmem:[%s3] sm:$0xff]
        %v1296 = vld [vmem:[%s3 + $0x8] sm:$0xff]
        %v1297 = vld [vmem:[%s3 + $0x10] sm:$0xff]
        %v1298 = vld [vmem:[%s3 + $0x18] sm:$0xff]
        %v1299 = vld [vmem:[%s3 + $0x20] sm:$0xff]
        %v1300 = vld [vmem:[%s3 + $0x28] sm:$0xff]
        %v1301 = vld [vmem:[%s3 + $0x30] sm:$0xff]
        %v1302 = vld [vmem:[%s3 + $0x38] sm:$0xff]
        %v1303 = vld [vmem:[%s3 + $0x40] sm:$0xff]
        %v1304 = vld [vmem:[%s3 + $0x48] sm:$0xff]
        %v1305 = vld [vmem:[%s3 + $0x50] sm:$0xff]
        %v1306 = vld [vmem:[%s3 + $0x58] sm:$0xff]
        %v1307 = vld [vmem:[%s3 + $0x60] sm:$0xff]
        %v1308 = vld [vmem:[%s3 + $0x68] sm:$0xff]
        %v1309 = vld [vmem:[%s3 + $0x70] sm:$0xff]
        %v1310 = vld [vmem:[%s3 + $0x78] sm:$0xff]
        %v1311 = vld [vmem:[%s4] sm:$0x1]
        %v1313 = vperm.slane %v1311, 0
        %1315 = vmatpush.msra.mxu0 %v1310
        %1316 = vmatpush.msra.mxu0 %v1309
        %1317 = vmatpush.msra.mxu0 %v1308
        %1318 = vmatpush.msra.mxu0 %v1307
        %1319 = vmatpush.msra.mxu0 %v1306
        %1320 = vmatpush.msra.mxu0 %v1305
        %1321 = vmatpush.msra.mxu0 %v1304
        %1322 = vmatpush.msra.mxu0 %v1303
        %1323 = vmatpush.msra.mxu0 %v1302
        %1324 = vmatpush.msra.mxu0 %v1301
        %1325 = vmatpush.msra.mxu0 %v1300
        %1326 = vmatpush.msra.mxu0 %v1299
        %1327 = vmatpush.msra.mxu0 %v1298
        %1328 = vmatpush.msra.mxu0 %v1297
        %1329 = vmatpush.msra.mxu0 %v1296
        %1330 = vmatpush.msra.mxu0 %v1295
        %1331 = vmatmul.f32.gmra.mxu0 %v1272
        %v1332 = vpop.f32.mrf.mxu0
        %v1333 = vadd.f32 %v1313, %v1332
        %1334 = vdwg.mxu0
        %v1335 = vld [vmem:[%s5] sm:$0xff]
        %v1336 = vld [vmem:[%s5 + $0x8] sm:$0xff]
        %v1337 = vld [vmem:[%s5 + $0x10] sm:$0xff]
        %v1338 = vld [vmem:[%s5 + $0x18] sm:$0xff]
        %v1339 = vld [vmem:[%s5 + $0x20] sm:$0xff]
        %v1340 = vld [vmem:[%s5 + $0x28] sm:$0xff]
        %v1341 = vld [vmem:[%s5 + $0x30] sm:$0xff]
        %v1342 = vld [vmem:[%s5 + $0x38] sm:$0xff]
        %v1343 = vld [vmem:[%s5 + $0x40] sm:$0xff]
        %v1344 = vld [vmem:[%s5 + $0x48] sm:$0xff]
        %v1345 = vld [vmem:[%s5 + $0x50] sm:$0xff]
        %v1346 = vld [vmem:[%s5 + $0x58] sm:$0xff]
        %v1347 = vld [vmem:[%s5 + $0x60] sm:$0xff]
        %v1348 = vld [vmem:[%s5 + $0x68] sm:$0xff]
        %v1349 = vld [vmem:[%s5 + $0x70] sm:$0xff]
        %v1350 = vld [vmem:[%s5 + $0x78] sm:$0xff]
        %1351 = vmatpush.msra.mxu0 %v1350
        %1352 = vmatpush.msra.mxu0 %v1349
        %1353 = vmatpush.msra.mxu0 %v1348
        %1354 = vmatpush.msra.mxu0 %v1347
        %1355 = vmatpush.msra.mxu0 %v1346
        %1356 = vmatpush.msra.mxu0 %v1345
        %1357 = vmatpush.msra.mxu0 %v1344
        %1358 = vmatpush.msra.mxu0 %v1343
        %1359 = vmatpush.msra.mxu0 %v1342
        %1360 = vmatpush.msra.mxu0 %v1341
        %1361 = vmatpush.msra.mxu0 %v1340
        %1362 = vmatpush.msra.mxu0 %v1339
        %1363 = vmatpush.msra.mxu0 %v1338
        %1364 = vmatpush.msra.mxu0 %v1337
        %1365 = vmatpush.msra.mxu0 %v1336
        %1366 = vmatpush.msra.mxu0 %v1335
        %1367 = vmatmul.f32.gmra.mxu0 %v1333
        %v1368 = vpop.f32.mrf.mxu0
        %v1369 = vadd.f32 0.0, %v1368
        %1370 = vdwg.mxu0
        %1371 = vst [vmem:[%s293] sm:$0xff] %v1369
        %s1372 = sand.u32 %s164, 1
        %s1373 = scalar_lea.sflag [#allocation3], %s1372
        %s1374 = sand.u32 %s164, 1
        %s1375 = smul.addr %s1374, 8
        %s1376 = scalar_lea.vmem [#allocation2], %s1375
        %s1377 = sand.u32 %s190, 1
        %s1378 = scalar_lea.sflag [#allocation5], %s1377
        %s1379 = sand.u32 %s190, 1
        %s1380 = smul.addr %s1379, 8
        %s1381 = scalar_lea.vmem [#allocation4], %s1380
        // Predicated region
        $region45: #{tpu_custom_call.1} parent=43 // pred_check
          %p1382 = pneg %p174
        $region46: #{tpu_custom_call.1} parent=43 // pred_check_branch
          %1384 = sbr.rel (%p1382) target = $region48
        $region47: #{tpu_custom_call.1} parent=43 // pred_region
          %1386 = vsyncadd %s1373, 0
          %s1387 = smul.addr %s25, 8
          %s1388 = scalar_lea.hbm %s6, %s1387
          %s1390 = sshll.u32 %s1376, 4
          %s1391 = int_to_ptr.vmem [resolvable:$true] %s1390
          %s1392 = sshll.u32 %s1388, 4
          %s1393 = int_to_ptr.hbm [resolvable:$true] %s1392
          %1395 = dma.vmem_to_hbm [thread:$0]  %s1391, 128, %s1393, %s1373
        $region48: #{tpu_custom_call.1} parent=43 // pred_fallthru
          _
        // Predicated region
        $region49: #{tpu_custom_call.1} parent=43 // pred_check
          %p1396 = pneg %p200
        $region50: #{tpu_custom_call.1} parent=43 // pred_check_branch
          %1398 = sbr.rel (%p1396) target = $region52
        $region51: #{tpu_custom_call.1} parent=43 // pred_region
          %1400 = vsyncadd %s1378, 0
          %s1401 = smul.addr %s25, 8
          %s1402 = scalar_lea.hbm %s7, %s1401
          %s1404 = sshll.u32 %s1381, 4
          %s1405 = int_to_ptr.vmem [resolvable:$true] %s1404
          %s1406 = sshll.u32 %s1402, 4
          %s1407 = int_to_ptr.hbm [resolvable:$true] %s1406
          %1409 = dma.vmem_to_hbm [thread:$0]  %s1405, 128, %s1407, %s1378
        $region52: #{tpu_custom_call.1} parent=43 // pred_fallthru
          _
      $region44: #{tpu_custom_call.1} parent=5 // pred_fallthru
        _
      %p1410 = scmp.le.s32.totalorder 2, %s20
      // Predicated region
      $region53: #{tpu_custom_call.1} parent=5 // pred_check
        %p1411 = pneg %p1410
      $region54: #{tpu_custom_call.1} parent=5 // pred_check_branch
        %1413 = sbr.rel (%p1411) target = $region56
      $region55: #{tpu_custom_call.1} parent=5 // pred_region
        %s1414 = ssub.s32 %s20, 2
        // Predicated region
        $region57: #{tpu_custom_call.1} parent=55 // pred_check
          %p1415 = pneg %p180
        $region58: #{tpu_custom_call.1} parent=55 // pred_check_branch
          %1417 = sbr.rel (%p1415) target = $region60
        $region59: #{tpu_custom_call.1} parent=55 // pred_region
          %s1418 = sand.u32 %s165, 1
          %s1419 = scalar_lea.sflag [#allocation3], %s1418
          %s1420 = sand.u32 %s165, 1
          %s1421 = smul.addr %s1420, 8
          %s1422 = scalar_lea.vmem [#allocation2], %s1421
          %1424 = dma.done %s1419, 128
        $region60: #{tpu_custom_call.1} parent=55 // pred_fallthru
          _
        // Predicated region
        $region61: #{tpu_custom_call.1} parent=55 // pred_check
          %p1425 = pneg %p206
        $region62: #{tpu_custom_call.1} parent=55 // pred_check_branch
          %1427 = sbr.rel (%p1425) target = $region64
        $region63: #{tpu_custom_call.1} parent=55 // pred_region
          %s1428 = sand.u32 %s191, 1
          %s1429 = scalar_lea.sflag [#allocation5], %s1428
          %s1430 = sand.u32 %s191, 1
          %s1431 = smul.addr %s1430, 8
          %s1432 = scalar_lea.vmem [#allocation4], %s1431
          %1434 = dma.done %s1429, 128
        $region64: #{tpu_custom_call.1} parent=55 // pred_fallthru
          _
      $region56: #{tpu_custom_call.1} parent=5 // pred_fallthru
        _
    $region6: #{tpu_custom_call.1} parent=1 // loop_footer
      %s24 = sadd.s32 1, %s20
    $region7: #{tpu_custom_call.1} parent=1 // loop_footer_branch
      %19 = sbr.rel target = $region3
    $region8: #{tpu_custom_call.1} parent=1 // loop_exit
      _
    %1435 = vsyncpa [#allocation3], 1
    %s1436 = scalar_lea.sflag [#allocation3], 1
    %1437 = vsyncpa %s1436, 1
    %1438 = vsyncpa [#allocation5], 1
    %s1439 = scalar_lea.sflag [#allocation5], 1
    %1440 = vsyncpa %s1439, 1

</llo_original>
